<compile_context>
chip_gen: v7x
topology: tpu7x:2x2x1
jax: 0.10.0
libtpu: 0.0.40
codegen_flags: <defaults>
</compile_context>

<pallas_src>
import functools

import jax
import jax.numpy as jnp
from jax.experimental import pallas as pl
from jax.experimental.pallas import tpu as pltpu

# ---- model / test dimensions -----------------------------------------------
D_IN, D_HID, D_OUT = 16, 32, 8
BATCH, SET = 2, 8  # x: (batch, set_size, d_in); mean is over the set axis


# =============================== fused Pallas kernel =========================
def _dsmodel_kernel(x_ref, p_ref, w0_ref, b0_ref, w1_ref, b1_ref, o_ref):
    """Entire DSModel forward on a VMEM-resident token slab.

    x_ref : (B*S, d_in)        flattened input tokens
    p_ref : (B*S, B*S)         per-batch mean-and-broadcast operator
                               (P @ x)[b*S+s] = mean_s' x[b*S+s']
    w0_ref: (2*d_in, d_hid)    [lin0.weight^T ; lin1.weight^T] of DSLayer 1
    b0_ref: (1, d_hid)         lin0.bias + lin1.bias of DSLayer 1
    w1_ref: (2*d_hid, d_out)   [lin0.weight^T ; lin1.weight^T] of DSLayer 2
    b1_ref: (1, d_out)         lin0.bias + lin1.bias of DSLayer 2
    o_ref : (B*S, d_out)
    """
    x = x_ref[...]                                                   # (BS, Din)
    p = p_ref[...]                                                   # (BS, BS)

    # ---- DSLayer 1 + ReLU ----
    xm = jnp.dot(p, x, preferred_element_type=jnp.float32)           # per-batch mean, broadcast
    xc = jnp.concatenate([x, xm], axis=-1)                           # (BS, 2*Din)
    h = jnp.dot(xc, w0_ref[...], preferred_element_type=jnp.float32) + b0_ref[...]
    h = jnp.maximum(h, 0.0)                                          # (BS, Dhid)

    # ---- DSLayer 2 ----
    hm = jnp.dot(p, h, preferred_element_type=jnp.float32)
    hc = jnp.concatenate([h, hm], axis=-1)                           # (BS, 2*Dhid)
    out = jnp.dot(hc, w1_ref[...], preferred_element_type=jnp.float32) + b1_ref[...]
    o_ref[...] = out.astype(o_ref.dtype)


def ds_model_forward(params, x):
    """x: (B, S, d_in) -> (B, S, d_out); single fused pallas_call, no grid."""
    B, S, d_in = x.shape
    bs = B * S
    d_hid = params["l0_w0"].shape[1]
    d_out = params["l1_w0"].shape[1]

    xf = x.reshape(bs, d_in)

    # Per-batch mean-and-broadcast operator (constant given static B, S).
    batch_ids = jnp.arange(bs, dtype=jnp.int32) // S
    p = (batch_ids[:, None] == batch_ids[None, :]).astype(x.dtype) / jnp.asarray(S, x.dtype)

    # Fuse the two Linear layers of each DSLayer into one wide matmul.
    w0 = jnp.concatenate([params["l0_w0"], params["l0_w1"]], axis=0)     # (2*d_in, d_hid)
    b0 = (params["l0_b0"] + params["l0_b1"]).reshape(1, d_hid)
    w1 = jnp.concatenate([params["l1_w0"], params["l1_w1"]], axis=0)     # (2*d_hid, d_out)
    b1 = (params["l1_b0"] + params["l1_b1"]).reshape(1, d_out)

    vmem = pl.BlockSpec(memory_space=pltpu.MemorySpace.VMEM)
    out = pl.pallas_call(
        _dsmodel_kernel,
        out_shape=jax.ShapeDtypeStruct((bs, d_out), x.dtype),
        in_specs=[vmem] * 6,
        out_specs=vmem,
    )(xf, p, w0, b0, w1, b1)
    return out.reshape(B, S, d_out)


# ============================ pure-JAX reference =============================
def _ds_layer_ref(x, w_a, b_a, w_b, b_b):
    return (x @ w_a + b_a) + (jnp.mean(x, axis=1, keepdims=True) @ w_b + b_b)


def ds_model_ref(params, x):
    h = jax.nn.relu(
        _ds_layer_ref(x, params["l0_w0"], params["l0_b0"], params["l0_w1"], params["l0_b1"]))
    return _ds_layer_ref(h, params["l1_w0"], params["l1_b0"], params["l1_w1"], params["l1_b1"])


# ============================ deterministic init =============================
def init_params(key):
    ks = jax.random.split(key, 8)

    def w(k, din, dout):
        return jax.random.normal(k, (din, dout), jnp.float32) / jnp.sqrt(float(din))

    def b(k, dout):
        return 0.1 * jax.random.normal(k, (dout,), jnp.float32)

    return {
        # DSLayer 1 (d_in -> d_hid): lin0 acts on x, lin1 acts on mean(x)
        "l0_w0": w(ks[0], D_IN, D_HID), "l0_b0": b(ks[1], D_HID),
        "l0_w1": w(ks[2], D_IN, D_HID), "l0_b1": b(ks[3], D_HID),
        # DSLayer 2 (d_hid -> d_out)
        "l1_w0": w(ks[4], D_HID, D_OUT), "l1_b0": b(ks[5], D_OUT),
        "l1_w1": w(ks[6], D_HID, D_OUT), "l1_b1": b(ks[7], D_OUT),
    }


# ==================================== main ===================================
if __name__ == "__main__":
    key = jax.random.PRNGKey(0)
    pkey, xkey = jax.random.split(key)
    params = init_params(pkey)
    x = jax.random.normal(xkey, (BATCH, SET, D_IN), jnp.float32)

    fwd = jax.jit(ds_model_forward)
    out = fwd(params, x)
    jax.block_until_ready(out)

    assert out.shape == (BATCH, SET, D_OUT), out.shape
    assert bool(jnp.all(jnp.isfinite(out)))

    ref = ds_model_ref(params, x)
    assert bool(jnp.allclose(out, ref, atol=1e-4, rtol=1e-4)), float(
        jnp.max(jnp.abs(out - ref)))

    print("KERNEL_OK")
</pallas_src>

<mosaic_0001>
module attributes {stable_mosaic.version = 11 : i64} {
  func.func @_dsmodel_kernel(%arg0: memref<16x16xf32, #tpu.memory_space<vmem>>, %arg1: memref<16x16xf32, #tpu.memory_space<vmem>>, %arg2: memref<32x32xf32, #tpu.memory_space<vmem>>, %arg3: memref<1x32xf32, #tpu.memory_space<vmem>>, %arg4: memref<64x8xf32, #tpu.memory_space<vmem>>, %arg5: memref<1x8xf32, #tpu.memory_space<vmem>>, %arg6: memref<16x8xf32, #tpu.memory_space<vmem>>) attributes {dimension_semantics = [], scalar_prefetch = 0 : i64, scratch_operands = 0 : i64, tpu.core_type = #tpu.core_type<tc>} {
    %c0 = arith.constant 0 : index
    %c0_0 = arith.constant 0 : index
    %0 = vector.load %arg0[%c0, %c0_0] : memref<16x16xf32, #tpu.memory_space<vmem>>, vector<16x16xf32>
    %c0_1 = arith.constant 0 : index
    %c0_2 = arith.constant 0 : index
    %1 = vector.load %arg1[%c0_1, %c0_2] : memref<16x16xf32, #tpu.memory_space<vmem>>, vector<16x16xf32>
    %cst = arith.constant dense<0.000000e+00> : vector<16x16xf32>
    %2 = tpu.matmul %1, %0, %cst {dimension_numbers = #tpu.dot_dimension_numbers<[1], [0], [0], [1], [0, 0, 1, 1], [], []>} : vector<16x16xf32>, vector<16x16xf32>, vector<16x16xf32> -> vector<16x16xf32>
    %3 = tpu.concatenate %0, %2 in 1 : vector<16x16xf32>, vector<16x16xf32> -> vector<16x32xf32>
    %c0_3 = arith.constant 0 : index
    %c0_4 = arith.constant 0 : index
    %4 = vector.load %arg2[%c0_3, %c0_4] : memref<32x32xf32, #tpu.memory_space<vmem>>, vector<32x32xf32>
    %cst_5 = arith.constant dense<0.000000e+00> : vector<16x32xf32>
    %5 = tpu.matmul %3, %4, %cst_5 {dimension_numbers = #tpu.dot_dimension_numbers<[1], [0], [0], [1], [0, 0, 1, 1], [], []>} : vector<16x32xf32>, vector<32x32xf32>, vector<16x32xf32> -> vector<16x32xf32>
    %c0_6 = arith.constant 0 : index
    %c0_7 = arith.constant 0 : index
    %6 = vector.load %arg3[%c0_6, %c0_7] : memref<1x32xf32, #tpu.memory_space<vmem>>, vector<1x32xf32>
    %7 = vector.broadcast %6 : vector<1x32xf32> to vector<16x32xf32>
    %8 = arith.addf %5, %7 : vector<16x32xf32>
    %cst_8 = arith.constant 0.000000e+00 : f32
    %9 = vector.broadcast %cst_8 : f32 to vector<16x32xf32>
    %10 = arith.maximumf %8, %9 : vector<16x32xf32>
    %cst_9 = arith.constant dense<0.000000e+00> : vector<16x32xf32>
    %11 = tpu.matmul %1, %10, %cst_9 {dimension_numbers = #tpu.dot_dimension_numbers<[1], [0], [0], [1], [0, 0, 1, 1], [], []>} : vector<16x16xf32>, vector<16x32xf32>, vector<16x32xf32> -> vector<16x32xf32>
    %12 = tpu.concatenate %10, %11 in 1 : vector<16x32xf32>, vector<16x32xf32> -> vector<16x64xf32>
    %c0_10 = arith.constant 0 : index
    %c0_11 = arith.constant 0 : index
    %13 = vector.load %arg4[%c0_10, %c0_11] : memref<64x8xf32, #tpu.memory_space<vmem>>, vector<64x8xf32>
    %cst_12 = arith.constant dense<0.000000e+00> : vector<16x8xf32>
    %14 = tpu.matmul %12, %13, %cst_12 {dimension_numbers = #tpu.dot_dimension_numbers<[1], [0], [0], [1], [0, 0, 1, 1], [], []>} : vector<16x64xf32>, vector<64x8xf32>, vector<16x8xf32> -> vector<16x8xf32>
    %c0_13 = arith.constant 0 : index
    %c0_14 = arith.constant 0 : index
    %15 = vector.load %arg5[%c0_13, %c0_14] : memref<1x8xf32, #tpu.memory_space<vmem>>, vector<1x8xf32>
    %16 = vector.broadcast %15 : vector<1x8xf32> to vector<16x8xf32>
    %17 = arith.addf %14, %16 : vector<16x8xf32>
    %c0_15 = arith.constant 0 : index
    %c0_16 = arith.constant 0 : index
    %18 = vector.load %arg6[%c0_15, %c0_16] : memref<16x8xf32, #tpu.memory_space<vmem>>, vector<16x8xf32>
    tpu.vector_store %arg6[%c0_15, %c0_16], %17 {strides = array<i32>} : memref<16x8xf32, #tpu.memory_space<vmem>>, vector<16x8xf32>,
    return
  }
}

</mosaic_0001>

<llo_original>
// kernel: ds_model_forward.1
$region0: #{ds_model_forward.1}
  #allocation0 [shape = 'u32[]', space=smem, size = 0x4, offset = 0x4, fixed_abs, tag = 'smem constant byte address 0x4 - core index']
  #allocation1 [shape = 'u32[144,128]{1,0:T(1,128)}', space=vmem, size = 0x12000, scoped, tag = 'internal scratch']
  %s0 = inlined_call_operand.vmem [shape: f32[16,16], index: 0, kind: input, shape index: {}]
  %s1 = inlined_call_operand.vmem [shape: f32[16,16], index: 1, kind: input, shape index: {}]
  %s2 = inlined_call_operand.vmem [shape: f32[32,32], index: 2, kind: input, shape index: {}]
  %s3 = inlined_call_operand.vmem [shape: f32[1,32], index: 3, kind: input, shape index: {}]
  %s4 = inlined_call_operand.vmem [shape: f32[64,8], index: 4, kind: input, shape index: {}]
  %s5 = inlined_call_operand.vmem [shape: f32[1,8], index: 5, kind: input, shape index: {}]
  %s6 = inlined_call_operand.hbm [shape: f32[16,8], index: 6, kind: output, shape index: {}]
  %s7 = sld [smem:[#allocation0]]
  $region34: #{ds_model_forward.1} parent=0
    _
  %s9 = ssub.s32 1, %s7
  %s10 = scalar_select 0, %s9, %s7
  $region1: #{ds_model_forward.1} parent=0
    #allocation2 [shape = 'u8[8192]{0}', space=vmem, size = 0x2000, scoped, tag = 'output window, operand 0, single buffered']
    #allocation3 [shape = 's32[1]{0}', space=sflag, size = 0x4, scoped, tag = 'scoped memory for ds_model_forward.1']
    %11 = vsyncpa [#allocation3], 0
    // Predicated region
    $region2: #{ds_model_forward.1} parent=1 // pred_check
      _
    $region3: #{ds_model_forward.1} parent=1 // pred_check_branch
      %13 = sbr.rel (0) target = $region5
    $region4: #{ds_model_forward.1} parent=1 // pred_region
      _
    $region5: #{ds_model_forward.1} parent=1 // pred_fallthru
      _
    // Predicated region
    $region6: #{ds_model_forward.1} parent=1 // pred_check
      _
    $region7: #{ds_model_forward.1} parent=1 // pred_check_branch
      %15 = sbr.rel (0) target = $region9
    $region8: #{ds_model_forward.1} parent=1 // pred_region
      _
    $region9: #{ds_model_forward.1} parent=1 // pred_fallthru
      _
    // Predicated region
    $region10: #{ds_model_forward.1} parent=1 // pred_check
      _
    $region11: #{ds_model_forward.1} parent=1 // pred_check_branch
      %17 = sbr.rel (0) target = $region13
    $region12: #{ds_model_forward.1} parent=1 // pred_region
      _
    $region13: #{ds_model_forward.1} parent=1 // pred_fallthru
      _
    // Predicated region
    $region14: #{ds_model_forward.1} parent=1 // pred_check
      _
    $region15: #{ds_model_forward.1} parent=1 // pred_check_branch
      %19 = sbr.rel (0) target = $region17
    $region16: #{ds_model_forward.1} parent=1 // pred_region
      _
    $region17: #{ds_model_forward.1} parent=1 // pred_fallthru
      _
    // Predicated region
    $region18: #{ds_model_forward.1} parent=1 // pred_check
      _
    $region19: #{ds_model_forward.1} parent=1 // pred_check_branch
      %21 = sbr.rel (0) target = $region21
    $region20: #{ds_model_forward.1} parent=1 // pred_region
      _
    $region21: #{ds_model_forward.1} parent=1 // pred_fallthru
      _
    // Predicated region
    $region22: #{ds_model_forward.1} parent=1 // pred_check
      _
    $region23: #{ds_model_forward.1} parent=1 // pred_check_branch
      %23 = sbr.rel (0) target = $region25
    $region24: #{ds_model_forward.1} parent=1 // pred_region
      _
    $region25: #{ds_model_forward.1} parent=1 // pred_fallthru
      _
    %v24 = vld [vmem:[%s0] sm:$0xff]
    %v25 = vld [vmem:[%s0 + $0x8] sm:$0xff]
    %v26 = vld [vmem:[%s1] sm:$0xff]
    %v27 = vld [vmem:[%s1 + $0x8] sm:$0xff]
    %vm28 = vcmask 130048
    %v30 = vsel %vm28, %v26, 0
    %v33 = vsel %vm28, %v27, 0
    %35 = vmatprep.subr.mxu0 0.0
    %36 = vmatpush1.msra.mxu0 %v24
    %37 = vmatprep.subr.mxu0 0.0
    %38 = vmatpush1.msra.mxu0 %v25
    %39 = vmatprep.subr.mxu0 0.0
    %40 = vmatpush1.msra.mxu0 0.0
    %41 = vmatprep.subr.mxu0 0.0
    %42 = vmatpush1.msra.mxu0 0.0
    %43 = vmatprep.subr.mxu0 0.0
    %44 = vmatpush1.msra.mxu0 0.0
    %45 = vmatprep.subr.mxu0 0.0
    %46 = vmatpush1.msra.mxu0 0.0
    %47 = vmatprep.subr.mxu0 0.0
    %48 = vmatpush1.msra.mxu0 0.0
    %49 = vmatprep.subr.mxu0 0.0
    %50 = vmatpush1.msra.mxu0 0.0
    %51 = vmatprep.subr.mxu0 0.0
    %52 = vmatpush1.msra.mxu0 0.0
    %53 = vmatprep.subr.mxu0 0.0
    %54 = vmatpush1.msra.mxu0 0.0
    %55 = vmatprep.subr.mxu0 0.0
    %56 = vmatpush1.msra.mxu0 0.0
    %57 = vmatprep.subr.mxu0 0.0
    %58 = vmatpush1.msra.mxu0 0.0
    %59 = vmatprep.subr.mxu0 0.0
    %60 = vmatpush1.msra.mxu0 0.0
    %61 = vmatprep.subr.mxu0 0.0
    %62 = vmatpush1.msra.mxu0 0.0
    %63 = vmatprep.subr.mxu0 0.0
    %64 = vmatpush1.msra.mxu0 0.0
    %65 = vmatprep.subr.mxu0 0.0
    %66 = vmatpush1.msra.mxu0 0.0
    %67 = vmatprep.subr.mxu0 0.0
    %68 = vmatpush1.msra.mxu0 0.0
    %69 = vmatprep.subr.mxu0 0.0
    %70 = vmatpush1.msra.mxu0 0.0
    %71 = vmatprep.subr.mxu0 0.0
    %72 = vmatpush1.msra.mxu0 0.0
    %73 = vmatprep.subr.mxu0 0.0
    %74 = vmatpush1.msra.mxu0 0.0
    %75 = vmatprep.subr.mxu0 0.0
    %76 = vmatpush1.msra.mxu0 0.0
    %77 = vmatprep.subr.mxu0 0.0
    %78 = vmatpush1.msra.mxu0 0.0
    %79 = vmatprep.subr.mxu0 0.0
    %80 = vmatpush1.msra.mxu0 0.0
    %81 = vmatprep.subr.mxu0 0.0
    %82 = vmatpush1.msra.mxu0 0.0
    %83 = vmatprep.subr.mxu0 0.0
    %84 = vmatpush1.msra.mxu0 0.0
    %85 = vmatprep.subr.mxu0 0.0
    %86 = vmatpush1.msra.mxu0 0.0
    %87 = vmatprep.subr.mxu0 0.0
    %88 = vmatpush1.msra.mxu0 0.0
    %89 = vmatprep.subr.mxu0 0.0
    %90 = vmatpush1.msra.mxu0 0.0
    %91 = vmatprep.subr.mxu0 0.0
    %92 = vmatpush1.msra.mxu0 0.0
    %93 = vmatprep.subr.mxu0 0.0
    %94 = vmatpush1.msra.mxu0 0.0
    %95 = vmatprep.subr.mxu0 0.0
    %96 = vmatpush1.msra.mxu0 0.0
    %97 = vmatprep.subr.mxu0 0.0
    %98 = vmatpush1.msra.mxu0 0.0
    %99 = vmatprep.mubr.f32.mxu0 0.0
    %100 = vmatmul.mubr.f32.gmra.mrb[0].mxu0 %v30
    %v101 = vpop.f32.mrb[0].mxu0
    %v102 = vadd.f32 0.0, %v101
    %v103 = vpop.f32.mrb[0].mxu0
    %104 = vmatprep.mubr.f32.mxu0 0.0
    %105 = vmatmul.mubr.f32.gmra.mrb[0].mxu0 %v33
    %v106 = vpop.f32.mrb[0].mxu0
    %v107 = vadd.f32 0.0, %v106
    %v108 = vpop.f32.mrb[0].mxu0
    %109 = vdwg.mxu0
    %112 = vrot.lane.b32.xlu0 %v102, 16
    %v113 = vpop.permute.xlu0 %112
    %114 = vrot.lane.b32.xlu0 %v107, 16
    %v115 = vpop.permute.xlu0 %114
    %v118 = vsel %vm28, %v24, %v113
    %v119 = vsel %vm28, %v25, %v115
    %v120 = vld [vmem:[%s2] sm:$0xff]
    %v121 = vld [vmem:[%s2 + $0x8] sm:$0xff]
    %v122 = vld [vmem:[%s2 + $0x10] sm:$0xff]
    %v123 = vld [vmem:[%s2 + $0x18] sm:$0xff]
    %v124 = vld [vmem:[%s3] sm:$0x1]
    %v126 = vlaneseq
    %v127 = vshrl.u32 %v126, 7
    %v128 = vsub.s32 0, %v127
    %v129 = vrot.slane %v124, %v128
    %vm131 = vcmask 261120
    %v133 = vsel %vm131, %v118, 0
    %v136 = vsel %vm131, %v119, 0
    %138 = vmatprep.subr.mxu0 0.0
    %139 = vmatpush1.msra.mxu0 %v120
    %140 = vmatprep.subr.mxu0 0.0
    %141 = vmatpush1.msra.mxu0 %v121
    %142 = vmatprep.subr.mxu0 0.0
    %143 = vmatpush1.msra.mxu0 %v122
    %144 = vmatprep.subr.mxu0 0.0
    %145 = vmatpush1.msra.mxu0 %v123
    %146 = vmatprep.subr.mxu0 0.0
    %147 = vmatpush1.msra.mxu0 0.0
    %148 = vmatprep.subr.mxu0 0.0
    %149 = vmatpush1.msra.mxu0 0.0
    %150 = vmatprep.subr.mxu0 0.0
    %151 = vmatpush1.msra.mxu0 0.0
    %152 = vmatprep.subr.mxu0 0.0
    %153 = vmatpush1.msra.mxu0 0.0
    %154 = vmatprep.subr.mxu0 0.0
    %155 = vmatpush1.msra.mxu0 0.0
    %156 = vmatprep.subr.mxu0 0.0
    %157 = vmatpush1.msra.mxu0 0.0
    %158 = vmatprep.subr.mxu0 0.0
    %159 = vmatpush1.msra.mxu0 0.0
    %160 = vmatprep.subr.mxu0 0.0
    %161 = vmatpush1.msra.mxu0 0.0
    %162 = vmatprep.subr.mxu0 0.0
    %163 = vmatpush1.msra.mxu0 0.0
    %164 = vmatprep.subr.mxu0 0.0
    %165 = vmatpush1.msra.mxu0 0.0
    %166 = vmatprep.subr.mxu0 0.0
    %167 = vmatpush1.msra.mxu0 0.0
    %168 = vmatprep.subr.mxu0 0.0
    %169 = vmatpush1.msra.mxu0 0.0
    %170 = vmatprep.subr.mxu0 0.0
    %171 = vmatpush1.msra.mxu0 0.0
    %172 = vmatprep.subr.mxu0 0.0
    %173 = vmatpush1.msra.mxu0 0.0
    %174 = vmatprep.subr.mxu0 0.0
    %175 = vmatpush1.msra.mxu0 0.0
    %176 = vmatprep.subr.mxu0 0.0
    %177 = vmatpush1.msra.mxu0 0.0
    %178 = vmatprep.subr.mxu0 0.0
    %179 = vmatpush1.msra.mxu0 0.0
    %180 = vmatprep.subr.mxu0 0.0
    %181 = vmatpush1.msra.mxu0 0.0
    %182 = vmatprep.subr.mxu0 0.0
    %183 = vmatpush1.msra.mxu0 0.0
    %184 = vmatprep.subr.mxu0 0.0
    %185 = vmatpush1.msra.mxu0 0.0
    %186 = vmatprep.subr.mxu0 0.0
    %187 = vmatpush1.msra.mxu0 0.0
    %188 = vmatprep.subr.mxu0 0.0
    %189 = vmatpush1.msra.mxu0 0.0
    %190 = vmatprep.subr.mxu0 0.0
    %191 = vmatpush1.msra.mxu0 0.0
    %192 = vmatprep.subr.mxu0 0.0
    %193 = vmatpush1.msra.mxu0 0.0
    %194 = vmatprep.subr.mxu0 0.0
    %195 = vmatpush1.msra.mxu0 0.0
    %196 = vmatprep.subr.mxu0 0.0
    %197 = vmatpush1.msra.mxu0 0.0
    %198 = vmatprep.subr.mxu0 0.0
    %199 = vmatpush1.msra.mxu0 0.0
    %200 = vmatprep.subr.mxu0 0.0
    %201 = vmatpush1.msra.mxu0 0.0
    %202 = vmatprep.mubr.f32.mxu0 0.0
    %203 = vmatmul.mubr.f32.gmra.mrb[0].mxu0 %v133
    %v204 = vpop.f32.mrb[0].mxu0
    %v205 = vadd.f32 %v129, %v204
    %v206 = vpop.f32.mrb[0].mxu0
    %207 = vmatprep.mubr.f32.mxu0 0.0
    %208 = vmatmul.mubr.f32.gmra.mrb[0].mxu0 %v136
    %v209 = vpop.f32.mrb[0].mxu0
    %v210 = vadd.f32 %v129, %v209
    %v211 = vpop.f32.mrb[0].mxu0
    %212 = vdwg.mxu0
    %v213 = vmax.f32 %v205, 0.0
    %v214 = vmax.f32 %v210, 0.0
    %215 = vmatprep.subr.mxu0 0.0
    %216 = vmatpush1.msra.mxu0 %v213
    %217 = vmatprep.subr.mxu0 0.0
    %218 = vmatpush1.msra.mxu0 %v214
    %219 = vmatprep.subr.mxu0 0.0
    %220 = vmatpush1.msra.mxu0 0.0
    %221 = vmatprep.subr.mxu0 0.0
    %222 = vmatpush1.msra.mxu0 0.0
    %223 = vmatprep.subr.mxu0 0.0
    %224 = vmatpush1.msra.mxu0 0.0
    %225 = vmatprep.subr.mxu0 0.0
    %226 = vmatpush1.msra.mxu0 0.0
    %227 = vmatprep.subr.mxu0 0.0
    %228 = vmatpush1.msra.mxu0 0.0
    %229 = vmatprep.subr.mxu0 0.0
    %230 = vmatpush1.msra.mxu0 0.0
    %231 = vmatprep.subr.mxu0 0.0
    %232 = vmatpush1.msra.mxu0 0.0
    %233 = vmatprep.subr.mxu0 0.0
    %234 = vmatpush1.msra.mxu0 0.0
    %235 = vmatprep.subr.mxu0 0.0
    %236 = vmatpush1.msra.mxu0 0.0
    %237 = vmatprep.subr.mxu0 0.0
    %238 = vmatpush1.msra.mxu0 0.0
    %239 = vmatprep.subr.mxu0 0.0
    %240 = vmatpush1.msra.mxu0 0.0
    %241 = vmatprep.subr.mxu0 0.0
    %242 = vmatpush1.msra.mxu0 0.0
    %243 = vmatprep.subr.mxu0 0.0
    %244 = vmatpush1.msra.mxu0 0.0
    %245 = vmatprep.subr.mxu0 0.0
    %246 = vmatpush1.msra.mxu0 0.0
    %247 = vmatprep.subr.mxu0 0.0
    %248 = vmatpush1.msra.mxu0 0.0
    %249 = vmatprep.subr.mxu0 0.0
    %250 = vmatpush1.msra.mxu0 0.0
    %251 = vmatprep.subr.mxu0 0.0
    %252 = vmatpush1.msra.mxu0 0.0
    %253 = vmatprep.subr.mxu0 0.0
    %254 = vmatpush1.msra.mxu0 0.0
    %255 = vmatprep.subr.mxu0 0.0
    %256 = vmatpush1.msra.mxu0 0.0
    %257 = vmatprep.subr.mxu0 0.0
    %258 = vmatpush1.msra.mxu0 0.0
    %259 = vmatprep.subr.mxu0 0.0
    %260 = vmatpush1.msra.mxu0 0.0
    %261 = vmatprep.subr.mxu0 0.0
    %262 = vmatpush1.msra.mxu0 0.0
    %263 = vmatprep.subr.mxu0 0.0
    %264 = vmatpush1.msra.mxu0 0.0
    %265 = vmatprep.subr.mxu0 0.0
    %266 = vmatpush1.msra.mxu0 0.0
    %267 = vmatprep.subr.mxu0 0.0
    %268 = vmatpush1.msra.mxu0 0.0
    %269 = vmatprep.subr.mxu0 0.0
    %270 = vmatpush1.msra.mxu0 0.0
    %271 = vmatprep.subr.mxu0 0.0
    %272 = vmatpush1.msra.mxu0 0.0
    %273 = vmatprep.subr.mxu0 0.0
    %274 = vmatpush1.msra.mxu0 0.0
    %275 = vmatprep.subr.mxu0 0.0
    %276 = vmatpush1.msra.mxu0 0.0
    %277 = vmatprep.subr.mxu0 0.0
    %278 = vmatpush1.msra.mxu0 0.0
    %279 = vmatprep.mubr.f32.mxu0 0.0
    %280 = vmatmul.mubr.f32.gmra.mrb[0].mxu0 %v30
    %v281 = vpop.f32.mrb[0].mxu0
    %v282 = vadd.f32 0.0, %v281
    %v283 = vpop.f32.mrb[0].mxu0
    %284 = vmatprep.mubr.f32.mxu0 0.0
    %285 = vmatmul.mubr.f32.gmra.mrb[0].mxu0 %v33
    %v286 = vpop.f32.mrb[0].mxu0
    %v287 = vadd.f32 0.0, %v286
    %v288 = vpop.f32.mrb[0].mxu0
    %289 = vdwg.mxu0
    %292 = vrot.lane.b32.xlu0 %v282, 32
    %v293 = vpop.permute.xlu0 %292
    %294 = vrot.lane.b32.xlu0 %v287, 32
    %v295 = vpop.permute.xlu0 %294
    %v298 = vsel %vm131, %v213, %v293
    %v299 = vsel %vm131, %v214, %v295
    %v300 = vld [vmem:[%s4] sm:$0xff]
    %v301 = vld [vmem:[%s4 + $0x8] sm:$0xff]
    %v302 = vld [vmem:[%s4 + $0x10] sm:$0xff]
    %v303 = vld [vmem:[%s4 + $0x18] sm:$0xff]
    %v304 = vld [vmem:[%s4 + $0x20] sm:$0xff]
    %v305 = vld [vmem:[%s4 + $0x28] sm:$0xff]
    %v306 = vld [vmem:[%s4 + $0x30] sm:$0xff]
    %v307 = vld [vmem:[%s4 + $0x38] sm:$0xff]
    %v308 = vld [vmem:[%s5] sm:$0x1]
    %v310 = vlaneseq
    %v311 = vshrl.u32 %v310, 7
    %v312 = vsub.s32 0, %v311
    %v313 = vrot.slane %v308, %v312
    %vm315 = vcmask 523264
    %v317 = vsel %vm315, %v298, 0
    %v320 = vsel %vm315, %v299, 0
    %322 = vmatprep.subr.mxu0 0.0
    %323 = vmatpush1.msra.mxu0 %v300
    %324 = vmatprep.subr.mxu0 0.0
    %325 = vmatpush1.msra.mxu0 %v301
    %326 = vmatprep.subr.mxu0 0.0
    %327 = vmatpush1.msra.mxu0 %v302
    %328 = vmatprep.subr.mxu0 0.0
    %329 = vmatpush1.msra.mxu0 %v303
    %330 = vmatprep.subr.mxu0 0.0
    %331 = vmatpush1.msra.mxu0 %v304
    %332 = vmatprep.subr.mxu0 0.0
    %333 = vmatpush1.msra.mxu0 %v305
    %334 = vmatprep.subr.mxu0 0.0
    %335 = vmatpush1.msra.mxu0 %v306
    %336 = vmatprep.subr.mxu0 0.0
    %337 = vmatpush1.msra.mxu0 %v307
    %338 = vmatprep.subr.mxu0 0.0
    %339 = vmatpush1.msra.mxu0 0.0
    %340 = vmatprep.subr.mxu0 0.0
    %341 = vmatpush1.msra.mxu0 0.0
    %342 = vmatprep.subr.mxu0 0.0
    %343 = vmatpush1.msra.mxu0 0.0
    %344 = vmatprep.subr.mxu0 0.0
    %345 = vmatpush1.msra.mxu0 0.0
    %346 = vmatprep.subr.mxu0 0.0
    %347 = vmatpush1.msra.mxu0 0.0
    %348 = vmatprep.subr.mxu0 0.0
    %349 = vmatpush1.msra.mxu0 0.0
    %350 = vmatprep.subr.mxu0 0.0
    %351 = vmatpush1.msra.mxu0 0.0
    %352 = vmatprep.subr.mxu0 0.0
    %353 = vmatpush1.msra.mxu0 0.0
    %354 = vmatprep.subr.mxu0 0.0
    %355 = vmatpush1.msra.mxu0 0.0
    %356 = vmatprep.subr.mxu0 0.0
    %357 = vmatpush1.msra.mxu0 0.0
    %358 = vmatprep.subr.mxu0 0.0
    %359 = vmatpush1.msra.mxu0 0.0
    %360 = vmatprep.subr.mxu0 0.0
    %361 = vmatpush1.msra.mxu0 0.0
    %362 = vmatprep.subr.mxu0 0.0
    %363 = vmatpush1.msra.mxu0 0.0
    %364 = vmatprep.subr.mxu0 0.0
    %365 = vmatpush1.msra.mxu0 0.0
    %366 = vmatprep.subr.mxu0 0.0
    %367 = vmatpush1.msra.mxu0 0.0
    %368 = vmatprep.subr.mxu0 0.0
    %369 = vmatpush1.msra.mxu0 0.0
    %370 = vmatprep.subr.mxu0 0.0
    %371 = vmatpush1.msra.mxu0 0.0
    %372 = vmatprep.subr.mxu0 0.0
    %373 = vmatpush1.msra.mxu0 0.0
    %374 = vmatprep.subr.mxu0 0.0
    %375 = vmatpush1.msra.mxu0 0.0
    %376 = vmatprep.subr.mxu0 0.0
    %377 = vmatpush1.msra.mxu0 0.0
    %378 = vmatprep.subr.mxu0 0.0
    %379 = vmatpush1.msra.mxu0 0.0
    %380 = vmatprep.subr.mxu0 0.0
    %381 = vmatpush1.msra.mxu0 0.0
    %382 = vmatprep.subr.mxu0 0.0
    %383 = vmatpush1.msra.mxu0 0.0
    %384 = vmatprep.subr.mxu0 0.0
    %385 = vmatpush1.msra.mxu0 0.0
    %386 = vmatprep.mubr.f32.mxu0 0.0
    %387 = vmatmul.mubr.f32.gmra.mrb[0].mxu0 %v317
    %v388 = vpop.f32.mrb[0].mxu0
    %v389 = vadd.f32 %v313, %v388
    %v390 = vpop.f32.mrb[0].mxu0
    %391 = vmatprep.mubr.f32.mxu0 0.0
    %392 = vmatmul.mubr.f32.gmra.mrb[0].mxu0 %v320
    %v393 = vpop.f32.mrb[0].mxu0
    %v394 = vadd.f32 %v313, %v393
    %v395 = vpop.f32.mrb[0].mxu0
    %396 = vdwg.mxu0
    %vm397 = vcmask 64512
    %398 = vst.msk [vmem:[#allocation2] sm:$0xff] %vm397, %v389
    %399 = vst.msk [vmem:[#allocation2 + $0x8] sm:$0xff] %vm397, %v394
    // Predicated region
    $region26: #{ds_model_forward.1} parent=1 // pred_check
      _
    $region27: #{ds_model_forward.1} parent=1 // pred_check_branch
      %401 = sbr.rel (0) target = $region29
    $region28: #{ds_model_forward.1} parent=1 // pred_region
      %s403 = ssub.s32 256, 256
      %404 = vsyncadd [#allocation3], %s403
      %s405 = sshll.u32 [#allocation2], 4
      %s406 = int_to_ptr.vmem [resolvable:$true] %s405
      %411 = dma.vmem_to_hbm [thread:$0]  %s406, 256, %s6, [#allocation3], 128, 128, 8
    $region29: #{ds_model_forward.1} parent=1 // pred_fallthru
      _
    // Predicated region
    $region30: #{ds_model_forward.1} parent=1 // pred_check
      _
    $region31: #{ds_model_forward.1} parent=1 // pred_check_branch
      %413 = sbr.rel (0) target = $region33
    $region32: #{ds_model_forward.1} parent=1 // pred_region
      %414 = dma.done [#allocation3], 256
    $region33: #{ds_model_forward.1} parent=1 // pred_fallthru
      _
    %415 = vsyncpa [#allocation3], 1

</llo_original>
